<compile_context>
chip_gen: v5e
topology: v5e:2x2
jax: 0.10.0
libtpu: 0.0.40
codegen_flags: <defaults>
</compile_context>

<pallas_src>
import functools

import jax
import jax.numpy as jnp
from jax import lax
from jax.experimental import pallas as pl
from jax.experimental.pallas import tpu as pltpu


def _self_attention_kernel(N, PF, Tn, n_tiles, mxu_dtype, exp_dtype, approx_recip,
                           gamma_ref,    # SMEM (1,)
                           x_ref,        # VMEM (C, N)    batch dim squeezed
                           w_ref,        # VMEM (R, C)    fused [wf; wg; wh], mxu_dtype
                           b_ref,        # VMEM (R, 1)    fused biases, f32
                           o_ref,        # VMEM (C, N)
                           f_scr,        # VMEM (PF, N)   mxu_dtype (key-side proj)
                           h_scr,        # VMEM (C, N)    f32       (value proj)
                           acc_scr):     # VMEM (C, N)    f32       (sa accumulator)
    f32 = jnp.float32

    # Fused f/g/h projections: one MXU pass in mxu_dtype, f32 accumulation,
    # one bias add.  x's live range ends right after this dot (re-read later).
    proj = jnp.dot(w_ref[...], x_ref[...].astype(mxu_dtype),
                   preferred_element_type=f32) + b_ref[...]             # (R, N)
    f_scr[...] = proj[0:PF, :].astype(mxu_dtype)      # rows >= C//8 are exactly 0
    g = proj[PF:2 * PF, :].astype(mxu_dtype)          # (PF, N), used whole
    h_scr[...] = proj[2 * PF:, :]                     # (C, N) f32
    acc_scr[...] = jnp.zeros_like(acc_scr)

    # Attention, tiled over the sa-contraction ("key") axis j in Tn-wide slabs.
    def tile_body(t, carry):
        j0 = pl.multiple_of(t * Tn, Tn)
        f_t = f_scr[:, pl.ds(j0, Tn)]                                   # (PF, Tn)
        # scores^T slab: s_t[i, j'] = sum_c g[c, i] * f[c, j0 + j'].
        s_t = lax.dot_general(g, f_t, (((0,), (0,)), ((), ())),
                              preferred_element_type=f32)               # (N, Tn)
        # Exact per-column softmax (every softmax row element i is in the slab).
        s_t = s_t - jnp.max(s_t, axis=0, keepdims=True)
        if exp_dtype == f32:
            p32 = jnp.exp(s_t)
            l = jnp.sum(p32, axis=0, keepdims=True)                     # (1, Tn)
            p_m = p32.astype(mxu_dtype)
        else:                                    # bf16 EUP fast path (v6e / v7x)
            p_m = jnp.exp(s_t.astype(exp_dtype))
            l = jnp.sum(p_m.astype(f32), axis=0, keepdims=True)
        inv_l = pl.reciprocal(l, approx=approx_recip)                   # EUP
        h_t = (h_scr[:, pl.ds(j0, Tn)] * inv_l).astype(mxu_dtype)       # (C, Tn)
        # sa[c, i] += sum_j' h_t[c, j'] * p_m[i, j']   (A @ B^T, MXU-native NT).
        # TODO(synk): confirm via pl.lower_as_mlir that this NT dot_general does
        # not emit an explicit XLU transpose of the (N, Tn) probability slab.
        acc_scr[...] += lax.dot_general(h_t, p_m, (((1,), (1,)), ((), ())),
                                        preferred_element_type=f32)     # (C, N)
        return carry

    lax.fori_loop(0, n_tiles, tile_body, 0, unroll=(n_tiles <= 4))

    # Residual epilogue: re-read x (keeps its live range out of the tile loop);
    # full-block, lane-dense store.
    o_ref[...] = (gamma_ref[0] * acc_scr[...] + x_ref[...]).astype(o_ref.dtype)


def _pick_tile_n(N, target=512):
    """Largest multiple-of-128 tile <= target that divides N; else one slab."""
    if N <= target:
        return N
    for t in range(target, 127, -128):
        if N % t == 0:
            return t
    # TODO(synk): support ragged N with a masked remainder tile instead of one slab.
    return N


def self_attention_pallas(x_nchw, params, *, mxu_dtype=jnp.float32,
                          approx_reciprocal=False, low_precision_softmax=False,
                          tile_n=None):
    """SAGAN SelfAttention forward.  x_nchw: (B, C, W, H) -> (B, C, W, H)."""
    B, C, W, H = x_nchw.shape
    N = W * H
    C8 = C // 8
    PF = max(8, ((C8 + 7) // 8) * 8)          # sublane-aligned f/g row count
    R = 2 * PF + C
    f32 = jnp.float32

    if tile_n is None:
        Tn = _pick_tile_n(N)
    else:
        Tn = min(int(tile_n), N)
        assert N % Tn == 0, "tile_n must divide N = W*H"
    n_tiles = N // Tn

    def pad_rows(a, rows):
        if a.shape[0] == rows:
            return a
        pad = jnp.zeros((rows - a.shape[0],) + a.shape[1:], a.dtype)
        return jnp.concatenate([a, pad], axis=0)

    wf = params["wf"].reshape(C8, C).astype(f32)
    wg = params["wg"].reshape(C8, C).astype(f32)
    wh = params["wh"].reshape(C, C).astype(f32)
    bf = params["bf"].reshape(C8).astype(f32)
    bg = params["bg"].reshape(C8).astype(f32)
    bh = params["bh"].reshape(C).astype(f32)

    # Stacked, zero-padded projection weight (MXU dtype) / bias (f32).
    w_all = jnp.concatenate([pad_rows(wf, PF), pad_rows(wg, PF), wh],
                            axis=0).astype(mxu_dtype)                       # (R, C)
    b_all = jnp.concatenate([pad_rows(bf, PF), pad_rows(bg, PF), bh],
                            axis=0)[:, None]                                # (R, 1)
    gamma = params["gamma"].reshape(1).astype(f32)

    # Natural layout: a free reshape -- NO HBM transpose of the activation.
    x_bcn = x_nchw.reshape(B, C, N)

    exp_dtype = mxu_dtype if (low_precision_softmax and mxu_dtype != f32) else f32

    # Deliberate scoped-VMEM sizing, clamped to the physical per-core VMEM
    # (v7x = 64 MiB; v5e/v6e = 128 MiB).
    itm = jnp.dtype(mxu_dtype).itemsize
    est = (4 * (2 * 2 * C * N)                 # x / out blocks, double-buffered
           + R * C * itm + 2 * 4 * R           # fused weights + bias (resident)
           + 4 * R * N                         # projection result (f32)
           + itm * 2 * PF * N                  # f scratch + g
           + 4 * 2 * C * N                     # h scratch + accumulator
           + 4 * 3 * N * Tn                    # score / prob slabs + temps
           + (4 + itm) * 2 * C * Tn)           # h tile + scaled tile
    try:
        phys = int(getattr(pltpu.get_tpu_info(), "vmem_capacity_bytes",
                           64 * 2 ** 20))
    except Exception:
        phys = 64 * 2 ** 20
    hi = min(int(0.75 * phys), 96 * 2 ** 20)
    vmem_limit = int(min(max(32 * 2 ** 20, 2 * est), hi))

    kernel = functools.partial(_self_attention_kernel, N, PF, Tn, n_tiles,
                               mxu_dtype, exp_dtype, approx_reciprocal)

    # TODO(synk): for B == 1, add a second parallel grid split over the output
    # spatial axis so both v7x TensorCores get work.
    out_bcn = pl.pallas_call(
        kernel,
        out_shape=jax.ShapeDtypeStruct((B, C, N), x_nchw.dtype),
        grid_spec=pltpu.PrefetchScalarGridSpec(
            num_scalar_prefetch=0,
            grid=(B,),
            in_specs=[
                pl.BlockSpec(memory_space=pltpu.SMEM),              # gamma (1,)
                pl.BlockSpec((None, C, N), lambda b: (b, 0, 0)),    # x image block
                pl.BlockSpec((R, C), lambda b: (0, 0)),             # fused W (resident)
                pl.BlockSpec((R, 1), lambda b: (0, 0)),             # fused bias (resident)
            ],
            out_specs=pl.BlockSpec((None, C, N), lambda b: (b, 0, 0)),
            scratch_shapes=[
                pltpu.VMEM((PF, N), mxu_dtype),        # f (key-side, tiled)
                pltpu.VMEM((C, N), f32),               # h (value, tiled)
                pltpu.VMEM((C, N), f32),               # sa accumulator
            ]),
        compiler_params=pltpu.CompilerParams(
            dimension_semantics=("parallel",),
            vmem_limit_bytes=vmem_limit),
    )(gamma, x_bcn, w_all, b_all)

    return out_bcn.reshape(B, C, W, H)


def init_params(key, C):
    """Mirrors the module __init__: xavier_uniform_ conv weights, zero biases,
    gamma = 0 (nn.Parameter(torch.zeros(1)))."""
    C8 = C // 8
    kf, kg, kh = jax.random.split(key, 3)

    def xavier(k, fan_out, fan_in):
        bound = (6.0 / (fan_in + fan_out)) ** 0.5
        return jax.random.uniform(k, (fan_out, fan_in), jnp.float32, -bound, bound)

    return {
        "wf": xavier(kf, C8, C), "bf": jnp.zeros((C8,), jnp.float32),
        "wg": xavier(kg, C8, C), "bg": jnp.zeros((C8,), jnp.float32),
        "wh": xavier(kh, C, C),  "bh": jnp.zeros((C,), jnp.float32),
        "gamma": jnp.zeros((1,), jnp.float32),
    }


def self_attention_ref(x_nchw, params):
    """Pure-JAX reference replicating the PyTorch forward (h @ attention)."""
    B, C, W, H = x_nchw.shape
    N = W * H
    hp = jax.lax.Precision.HIGHEST
    x = x_nchw.reshape(B, C, N)
    f = jnp.einsum("oc,bcn->bon", params["wf"], x, precision=hp) + params["bf"][None, :, None]
    g = jnp.einsum("oc,bcn->bon", params["wg"], x, precision=hp) + params["bg"][None, :, None]
    h = jnp.einsum("oc,bcn->bon", params["wh"], x, precision=hp) + params["bh"][None, :, None]
    attn = jax.nn.softmax(jnp.einsum("bcn,bcm->bnm", f, g, precision=hp), axis=-1)
    sa = jnp.einsum("bcn,bnm->bcm", h, attn, precision=hp)
    out = params["gamma"][0] * sa + x
    return out.reshape(B, C, W, H)


if __name__ == "__main__":
    key = jax.random.PRNGKey(0)
    k_x, k_p = jax.random.split(key)

    B, C, W, H = 2, 32, 16, 16          # in_dim=32 -> f/g project to 32//8 = 4 channels
    x = jax.random.normal(k_x, (B, C, W, H), jnp.float32)
    params = init_params(k_p, C)
    # gamma initializes to 0 in the module; use a nonzero value here so the
    # attention path is actually exercised by the correctness check.
    params["gamma"] = jnp.array([0.75], jnp.float32)

    ref = jax.block_until_ready(self_attention_ref(x, params))

    # Exact path (f32 MXU, exact reciprocal); single key slab (N=256 <= 512).
    out_f32 = jax.block_until_ready(self_attention_pallas(x, params))
    assert out_f32.shape == (B, C, W, H)
    assert jnp.allclose(out_f32, ref, atol=2e-4, rtol=2e-4)

    # Exact path with the key-axis tiling loop exercised (Tn=128 -> 2 slabs).
    out_tiled = jax.block_until_ready(self_attention_pallas(x, params, tile_n=128))
    assert jnp.allclose(out_tiled, ref, atol=2e-4, rtol=2e-4)

    # Fast path for v6e/v7x: bf16 MXU operands (projection included), bf16 exp,
    # approximate EUP reciprocal; f32 accumulation -- loose sanity bound only.
    out_bf16 = jax.block_until_ready(
        self_attention_pallas(x, params, mxu_dtype=jnp.bfloat16,
                              approx_reciprocal=True, low_precision_softmax=True,
                              tile_n=128))
    assert bool(jnp.max(jnp.abs(out_bf16 - ref)) < 0.3)

    print("KERNEL_OK")
</pallas_src>

<mosaic_0001>
module attributes {stable_mosaic.version = 11 : i64} {
  func.func @_self_attention_kernel(%arg0: i32, %arg1: memref<1xf32, #tpu.memory_space<smem>>, %arg2: memref<1x32x256xf32, #tpu.memory_space<vmem>>, %arg3: memref<48x32xf32, #tpu.memory_space<vmem>>, %arg4: memref<48x1xf32, #tpu.memory_space<vmem>>, %arg5: memref<1x32x256xf32, #tpu.memory_space<vmem>>, %arg6: memref<8x256xf32, #tpu.memory_space<vmem>>, %arg7: memref<32x256xf32, #tpu.memory_space<vmem>>, %arg8: memref<32x256xf32, #tpu.memory_space<vmem>>) attributes {dimension_semantics = [#tpu.dimension_semantics<parallel>], iteration_bounds = array<i64: 2>, scalar_prefetch = 0 : i64, scratch_operands = 3 : i64, tpu.core_type = #tpu.core_type<tc>, window_params = [{transform_indices = @transform_0, window_bounds = array<i64: 1>}, {transform_indices = @transform_1, window_bounds = array<i64: 1, 32, 256>}, {pipeline_mode = #tpu.pipeline_mode<synchronous>, transform_indices = @transform_2, window_bounds = array<i64: 48, 32>}, {pipeline_mode = #tpu.pipeline_mode<synchronous>, transform_indices = @transform_3, window_bounds = array<i64: 48, 1>}, {transform_indices = @transform_4, window_bounds = array<i64: 1, 32, 256>}]} {
    %c0 = arith.constant 0 : index
    %c0_0 = arith.constant 0 : index
    %0 = vector.load %arg3[%c0, %c0_0] : memref<48x32xf32, #tpu.memory_space<vmem>>, vector<48x32xf32>
    %c0_1 = arith.constant 0 : index
    %c0_2 = arith.constant 0 : index
    %c0_3 = arith.constant 0 : index
    %1 = vector.load %arg2[%c0_1, %c0_2, %c0_3] : memref<1x32x256xf32, #tpu.memory_space<vmem>>, vector<1x32x256xf32>
    %2 = vector.shape_cast %1 : vector<1x32x256xf32> to vector<32x256xf32>
    %cst = arith.constant dense<0.000000e+00> : vector<48x256xf32>
    %3 = tpu.matmul %0, %2, %cst {dimension_numbers = #tpu.dot_dimension_numbers<[1], [0], [0], [1], [0, 0, 1, 1], [], []>} : vector<48x32xf32>, vector<32x256xf32>, vector<48x256xf32> -> vector<48x256xf32>
    %c0_4 = arith.constant 0 : index
    %c0_5 = arith.constant 0 : index
    %4 = vector.load %arg4[%c0_4, %c0_5] : memref<48x1xf32, #tpu.memory_space<vmem>>, vector<48x1xf32>
    %5 = vector.broadcast %4 : vector<48x1xf32> to vector<48x256xf32>
    %6 = arith.addf %3, %5 : vector<48x256xf32>
    %7 = vector.extract_strided_slice %6 {offsets = [0, 0], sizes = [8, 256], strides = [1, 1]} : vector<48x256xf32> to vector<8x256xf32>
    %c0_6 = arith.constant 0 : index
    %c0_7 = arith.constant 0 : index
    %8 = vector.load %arg6[%c0_6, %c0_7] : memref<8x256xf32, #tpu.memory_space<vmem>>, vector<8x256xf32>
    tpu.vector_store %arg6[%c0_6, %c0_7], %7 {strides = array<i32>} : memref<8x256xf32, #tpu.memory_space<vmem>>, vector<8x256xf32>,
    %9 = vector.extract_strided_slice %6 {offsets = [8, 0], sizes = [8, 256], strides = [1, 1]} : vector<48x256xf32> to vector<8x256xf32>
    %10 = vector.extract_strided_slice %6 {offsets = [16, 0], sizes = [32, 256], strides = [1, 1]} : vector<48x256xf32> to vector<32x256xf32>
    %c0_8 = arith.constant 0 : index
    %c0_9 = arith.constant 0 : index
    %11 = vector.load %arg7[%c0_8, %c0_9] : memref<32x256xf32, #tpu.memory_space<vmem>>, vector<32x256xf32>
    tpu.vector_store %arg7[%c0_8, %c0_9], %10 {strides = array<i32>} : memref<32x256xf32, #tpu.memory_space<vmem>>, vector<32x256xf32>,
    %cst_10 = arith.constant 0.000000e+00 : f32
    %12 = vector.broadcast %cst_10 : f32 to vector<32x256xf32>
    %c0_11 = arith.constant 0 : index
    %c0_12 = arith.constant 0 : index
    %13 = vector.load %arg8[%c0_11, %c0_12] : memref<32x256xf32, #tpu.memory_space<vmem>>, vector<32x256xf32>
    tpu.vector_store %arg8[%c0_11, %c0_12], %12 {strides = array<i32>} : memref<32x256xf32, #tpu.memory_space<vmem>>, vector<32x256xf32>,
    %c0_i32 = arith.constant 0 : i32
    %c256_i32 = arith.constant 256 : i32
    %14 = arith.muli %c0_i32, %c256_i32 : i32
    %15 = tpu.assume_multiple %14, 256 : i32
    %c0_13 = arith.constant 0 : index
    %16 = arith.index_cast %15 : i32 to index
    %17 = vector.load %arg6[%c0_13, %16] : memref<8x256xf32, #tpu.memory_space<vmem>>, vector<8x256xf32>
    %cst_14 = arith.constant dense<0.000000e+00> : vector<256x256xf32>
    %18 = tpu.matmul %9, %17, %cst_14 {dimension_numbers = #tpu.dot_dimension_numbers<[0], [0], [1], [1], [0, 1, 1, 1], [], []>} : vector<8x256xf32>, vector<8x256xf32>, vector<256x256xf32> -> vector<256x256xf32>
    %cst_15 = arith.constant dense<0xFF800000> : vector<256xf32>
    %19 = vector.multi_reduction <maximumf>, %18, %cst_15 [0] : vector<256x256xf32> to vector<256xf32>
    %20 = vector.shape_cast %19 : vector<256xf32> to vector<1x256xf32>
    %21 = vector.broadcast %20 : vector<1x256xf32> to vector<256x256xf32>
    %22 = arith.subf %18, %21 : vector<256x256xf32>
    %23 = math.exp %22 : vector<256x256xf32>
    %cst_16 = arith.constant dense<0.000000e+00> : vector<256xf32>
    %24 = vector.multi_reduction <add>, %23, %cst_16 [0] : vector<256x256xf32> to vector<256xf32>
    %25 = vector.shape_cast %24 : vector<256xf32> to vector<1x256xf32>
    %26 = tpu.reciprocal %25 : vector<1x256xf32> -> vector<1x256xf32>
    %c0_17 = arith.constant 0 : index
    %27 = arith.index_cast %15 : i32 to index
    %28 = vector.load %arg7[%c0_17, %27] : memref<32x256xf32, #tpu.memory_space<vmem>>, vector<32x256xf32>
    %29 = vector.broadcast %26 : vector<1x256xf32> to vector<32x256xf32>
    %30 = arith.mulf %28, %29 : vector<32x256xf32>
    %c0_18 = arith.constant 0 : index
    %c0_19 = arith.constant 0 : index
    %31 = vector.load %arg8[%c0_18, %c0_19] : memref<32x256xf32, #tpu.memory_space<vmem>>, vector<32x256xf32>
    %cst_20 = arith.constant dense<0.000000e+00> : vector<32x256xf32>
    %32 = tpu.matmul %30, %23, %cst_20 {dimension_numbers = #tpu.dot_dimension_numbers<[1], [1], [0], [0], [0, 0, 1, 0], [], []>} : vector<32x256xf32>, vector<256x256xf32>, vector<32x256xf32> -> vector<32x256xf32>
    %33 = arith.addf %31, %32 : vector<32x256xf32>
    %c0_21 = arith.constant 0 : index
    %c0_22 = arith.constant 0 : index
    %34 = vector.load %arg8[%c0_21, %c0_22] : memref<32x256xf32, #tpu.memory_space<vmem>>, vector<32x256xf32>
    tpu.vector_store %arg8[%c0_21, %c0_22], %33 {strides = array<i32>} : memref<32x256xf32, #tpu.memory_space<vmem>>, vector<32x256xf32>,
    %c1_i32 = arith.constant 1 : i32
    %c0_23 = arith.constant 0 : index
    %35 = memref.load %arg1[%c0_23] : memref<1xf32, #tpu.memory_space<smem>>
    %c0_24 = arith.constant 0 : index
    %c0_25 = arith.constant 0 : index
    %36 = vector.load %arg8[%c0_24, %c0_25] : memref<32x256xf32, #tpu.memory_space<vmem>>, vector<32x256xf32>
    %37 = vector.broadcast %35 : f32 to vector<32x256xf32>
    %38 = arith.mulf %37, %36 : vector<32x256xf32>
    %c0_26 = arith.constant 0 : index
    %c0_27 = arith.constant 0 : index
    %c0_28 = arith.constant 0 : index
    %39 = vector.load %arg2[%c0_26, %c0_27, %c0_28] : memref<1x32x256xf32, #tpu.memory_space<vmem>>, vector<1x32x256xf32>
    %40 = vector.shape_cast %39 : vector<1x32x256xf32> to vector<32x256xf32>
    %41 = arith.addf %38, %40 : vector<32x256xf32>
    %c0_29 = arith.constant 0 : index
    %c0_30 = arith.constant 0 : index
    %c0_31 = arith.constant 0 : index
    %42 = vector.load %arg5[%c0_29, %c0_30, %c0_31] : memref<1x32x256xf32, #tpu.memory_space<vmem>>, vector<1x32x256xf32>
    %43 = vector.shape_cast %42 : vector<1x32x256xf32> to vector<32x256xf32>
    %44 = vector.shape_cast %41 : vector<32x256xf32> to vector<1x32x256xf32>
    tpu.vector_store %arg5[%c0_29, %c0_30, %c0_31], %44 {strides = array<i32>} : memref<1x32x256xf32, #tpu.memory_space<vmem>>, vector<1x32x256xf32>,
    return
  }
  func.func @transform_0(%arg0: i32) -> i32 {
    %c0_i32 = arith.constant 0 : i32
    %c0_i32_0 = arith.constant 0 : i32
    return %c0_i32 : i32
  }
  func.func @transform_1(%arg0: i32) -> (i32, i32, i32) {
    %c0_i32 = arith.constant 0 : i32
    %c0_i32_0 = arith.constant 0 : i32
    %c0_i32_1 = arith.constant 0 : i32
    return %arg0, %c0_i32, %c0_i32_0 : i32, i32, i32
  }
  func.func @transform_2(%arg0: i32) -> (i32, i32) {
    %c0_i32 = arith.constant 0 : i32
    %c0_i32_0 = arith.constant 0 : i32
    %c0_i32_1 = arith.constant 0 : i32
    return %c0_i32, %c0_i32_0 : i32, i32
  }
  func.func @transform_3(%arg0: i32) -> (i32, i32) {
    %c0_i32 = arith.constant 0 : i32
    %c0_i32_0 = arith.constant 0 : i32
    %c0_i32_1 = arith.constant 0 : i32
    return %c0_i32, %c0_i32_0 : i32, i32
  }
  func.func @transform_4(%arg0: i32) -> (i32, i32, i32) {
    %c0_i32 = arith.constant 0 : i32
    %c0_i32_0 = arith.constant 0 : i32
    %c0_i32_1 = arith.constant 0 : i32
    return %arg0, %c0_i32, %c0_i32_0 : i32, i32, i32
  }
}

</mosaic_0001>

<llo_original>
// kernel: tpu_custom_call.1
$region0: #{tpu_custom_call.1}
  #allocation0 [shape = 'u32[]', space=smem, size = 0x4, offset = 0x4, fixed_abs, tag = 'smem constant byte address 0x4 - core index']
  #allocation1 [shape = 'u32[72,128]{1,0:T(1,128)}', space=vmem, size = 0x9000, scoped, tag = 'internal scratch']
  #allocation2 [shape = 'f32[8,256]{1,0:T(8,128)}', space=vmem, size = 0x2000, scoped, tag = 'scratch operand']
  #allocation3 [shape = 'f32[32,256]{1,0:T(8,128)}', space=vmem, size = 0x8000, scoped, tag = 'scratch operand']
  #allocation4 [shape = 'f32[32,256]{1,0:T(8,128)}', space=vmem, size = 0x8000, scoped, tag = 'scratch operand']
  #allocation5 [shape = 'f32[1]{0:T(128)S(6)}', space=smem, size = 0x200, scoped, tag = 'scoped memory for tpu_custom_call.1']
  %s0 = inlined_call_operand.<no memory space> [shape: f32[1], index: 0, kind: input, shape index: {}]
  %s1 = inlined_call_operand.vmem [shape: f32[2,32,256], index: 1, kind: input, shape index: {}]
  %s2 = inlined_call_operand.vmem [shape: f32[48,32], index: 2, kind: input, shape index: {}]
  %s3 = inlined_call_operand.vmem [shape: f32[48,1], index: 3, kind: input, shape index: {}]
  %s4 = inlined_call_operand.hbm [shape: f32[2,32,256], index: 4, kind: output, shape index: {}]
  %s5 = sld [smem:[#allocation0]]
  $region49: #{tpu_custom_call.1} parent=0
    _
  %s7 = ssub.s32 1, %s5
  %s8 = scalar_select 0, %s7, %s5
  %9 = sst [smem:[#allocation5]] %s0
  $region1: #{tpu_custom_call.1} parent=0
    #allocation6 [shape = 'u8[65536]{0}', space=vmem, size = 0x10000, scoped, tag = 'output window, operand 0']
    #allocation7 [shape = 's32[2]{0}', space=sflag, size = 0x8, scoped, tag = 'scoped memory for tpu_custom_call.1']
    %10 = vsyncpa [#allocation7], 0
    %s11 = scalar_lea.sflag [#allocation7], 1
    %12 = vsyncpa %s11, 0
    loop: start=0, step=1, limit=4
    $region2: #{tpu_custom_call.1} parent=1 // loop_pre_header
      _
    $region3: #{tpu_custom_call.1} parent=1 // loop_header
      %s14 = sphi 0, %s18
      %p15 = scmp.ge.s32.totalorder %s14, 4
      %s22 = sphi 0, %s22
      %s24 = sphi 0, %s22
      %s25 = sphi 0, %s24
      %s39 = sphi 0, %s25
      %s45 = sphi 0, %s47
      %s48 = sphi 0, %s45
      %s49 = sphi 0, %s48
      %s65 = sphi 0, %s49
      %s69 = sphi 0, %s69
      %s71 = sphi 0, %s69
      %s72 = sphi 0, %s71
      %s86 = sphi 0, %s72
      %s90 = sphi 0, %s90
      %s92 = sphi 0, %s90
      %s93 = sphi 0, %s92
      %s107 = sphi 0, %s93
      %s113 = sphi 0, %s115
      %s116 = sphi 0, %s113
      %s117 = sphi 0, %s116
      %s133 = sphi 0, %s117
    $region4: #{tpu_custom_call.1} parent=1 // loop_header_branch
      %17 = sbr.rel (%p15) target = $region8
    $region5: #{tpu_custom_call.1} parent=1 // loop_body
      %s19 = ssub.s32 %s14, 1
      %s20 = ssub.s32 %s14, 2
      %s21 = sadd.s32 %s14, 1
      %s23 = sadd.s32 %s22, 1
      %p26 = scmp.eq.s32.totalorder %s14, 1
      %p27 = scmp.ne.s32.totalorder %s22, %s24
      %p28 = scmp.eq.s32.totalorder %s14, 0
      %p29 = por %p27, %p28
      %p30 = scmp.ne.s32.totalorder %s22, %s24
      %p31 = scmp.eq.s32.totalorder %s19, 1
      %p32 = por %p30, %p31
      %p33 = scmp.ne.s32.totalorder %s24, %s25
      %p34 = scmp.eq.s32.totalorder %s19, 0
      %p35 = por %p33, %p34
      %p36 = scmp.ne.s32.totalorder %s24, %s25
      %p37 = scmp.eq.s32.totalorder %s20, 1
      %p38 = por %p36, %p37
      %p40 = scmp.ne.s32.totalorder %s25, %s39
      %p41 = scmp.eq.s32.totalorder %s20, 0
      %p42 = por %p40, %p41
      %s43 = ssub.s32 %s14, %s21
      %p44 = scmp.eq.s32.totalorder %s43, 0
      %s46 = sadd.s32 %s45, 1
      %s47 = scalar_select %p44, %s45, %s46
      %p50 = pneg %p44
      %p51 = scmp.eq.s32.totalorder %s14, 1
      %p52 = por %p50, %p51
      %p53 = scmp.ne.s32.totalorder %s45, %s48
      %p54 = scmp.eq.s32.totalorder %s14, 0
      %p55 = por %p53, %p54
      %p56 = scmp.ne.s32.totalorder %s45, %s48
      %p57 = scmp.eq.s32.totalorder %s19, 1
      %p58 = por %p56, %p57
      %p59 = scmp.ne.s32.totalorder %s48, %s49
      %p60 = scmp.eq.s32.totalorder %s19, 0
      %p61 = por %p59, %p60
      %p62 = scmp.ne.s32.totalorder %s48, %s49
      %p63 = scmp.eq.s32.totalorder %s20, 1
      %p64 = por %p62, %p63
      %p66 = scmp.ne.s32.totalorder %s49, %s65
      %p67 = scmp.eq.s32.totalorder %s20, 0
      %p68 = por %p66, %p67
      %s70 = sadd.s32 %s69, 1
      %p73 = scmp.eq.s32.totalorder %s14, 1
      %p74 = scmp.ne.s32.totalorder %s69, %s71
      %p75 = scmp.eq.s32.totalorder %s14, 0
      %p76 = por %p74, %p75
      %p77 = scmp.ne.s32.totalorder %s69, %s71
      %p78 = scmp.eq.s32.totalorder %s19, 1
      %p79 = por %p77, %p78
      %p80 = scmp.ne.s32.totalorder %s71, %s72
      %p81 = scmp.eq.s32.totalorder %s19, 0
      %p82 = por %p80, %p81
      %p83 = scmp.ne.s32.totalorder %s71, %s72
      %p84 = scmp.eq.s32.totalorder %s20, 1
      %p85 = por %p83, %p84
      %p87 = scmp.ne.s32.totalorder %s72, %s86
      %p88 = scmp.eq.s32.totalorder %s20, 0
      %p89 = por %p87, %p88
      %s91 = sadd.s32 %s90, 1
      %p94 = scmp.eq.s32.totalorder %s14, 1
      %p95 = scmp.ne.s32.totalorder %s90, %s92
      %p96 = scmp.eq.s32.totalorder %s14, 0
      %p97 = por %p95, %p96
      %p98 = scmp.ne.s32.totalorder %s90, %s92
      %p99 = scmp.eq.s32.totalorder %s19, 1
      %p100 = por %p98, %p99
      %p101 = scmp.ne.s32.totalorder %s92, %s93
      %p102 = scmp.eq.s32.totalorder %s19, 0
      %p103 = por %p101, %p102
      %p104 = scmp.ne.s32.totalorder %s92, %s93
      %p105 = scmp.eq.s32.totalorder %s20, 1
      %p106 = por %p104, %p105
      %p108 = scmp.ne.s32.totalorder %s93, %s107
      %p109 = scmp.eq.s32.totalorder %s20, 0
      %p110 = por %p108, %p109
      %s111 = ssub.s32 %s14, %s21
      %p112 = scmp.eq.s32.totalorder %s111, 0
      %s114 = sadd.s32 %s113, 1
      %s115 = scalar_select %p112, %s113, %s114
      %p118 = pneg %p112
      %p119 = scmp.eq.s32.totalorder %s14, 1
      %p120 = por %p118, %p119
      %p121 = scmp.ne.s32.totalorder %s113, %s116
      %p122 = scmp.eq.s32.totalorder %s14, 0
      %p123 = por %p121, %p122
      %p124 = scmp.ne.s32.totalorder %s113, %s116
      %p125 = scmp.eq.s32.totalorder %s19, 1
      %p126 = por %p124, %p125
      %p127 = scmp.ne.s32.totalorder %s116, %s117
      %p128 = scmp.eq.s32.totalorder %s19, 0
      %p129 = por %p127, %p128
      %p130 = scmp.ne.s32.totalorder %s116, %s117
      %p131 = scmp.eq.s32.totalorder %s20, 1
      %p132 = por %p130, %p131
      %p134 = scmp.ne.s32.totalorder %s117, %s133
      %p135 = scmp.eq.s32.totalorder %s20, 0
      %p136 = por %p134, %p135
      %p137 = scmp.le.s32.totalorder 1, %s14
      %p138 = scmp.lt.s32.totalorder %s14, 3
      %p139 = pnand %p137, %p138
      %p140 = pneg %p139
      // Predicated region
      $region9: #{tpu_custom_call.1} parent=5 // pred_check
        _
      $region10: #{tpu_custom_call.1} parent=5 // pred_check_branch
        %142 = sbr.rel (%p139) target = $region12
      $region11: #{tpu_custom_call.1} parent=5 // pred_region
        %s143 = ssub.s32 %s14, 1
        // Predicated region
        $region13: #{tpu_custom_call.1} parent=11 // pred_check
          %p144 = pneg %p35
        $region14: #{tpu_custom_call.1} parent=11 // pred_check_branch
          %146 = sbr.rel (%p144) target = $region16
        $region15: #{tpu_custom_call.1} parent=11 // pred_region
          _
        $region16: #{tpu_custom_call.1} parent=11 // pred_fallthru
          _
        // Predicated region
        $region17: #{tpu_custom_call.1} parent=11 // pred_check
          %p147 = pneg %p82
        $region18: #{tpu_custom_call.1} parent=11 // pred_check_branch
          %149 = sbr.rel (%p147) target = $region20
        $region19: #{tpu_custom_call.1} parent=11 // pred_region
          _
        $region20: #{tpu_custom_call.1} parent=11 // pred_fallthru
          _
        // Predicated region
        $region21: #{tpu_custom_call.1} parent=11 // pred_check
          %p150 = pneg %p103
        $region22: #{tpu_custom_call.1} parent=11 // pred_check_branch
          %152 = sbr.rel (%p150) target = $region24
        $region23: #{tpu_custom_call.1} parent=11 // pred_region
          _
        $region24: #{tpu_custom_call.1} parent=11 // pred_fallthru
          _
      $region12: #{tpu_custom_call.1} parent=5 // pred_fallthru
        _
      %p153 = scmp.lt.s32.totalorder %s14, 2
      // Predicated region
      $region25: #{tpu_custom_call.1} parent=5 // pred_check
        %p154 = pneg %p153
      $region26: #{tpu_custom_call.1} parent=5 // pred_check_branch
        %156 = sbr.rel (%p154) target = $region28
      $region27: #{tpu_custom_call.1} parent=5 // pred_region
        // Predicated region
        $region29: #{tpu_custom_call.1} parent=27 // pred_check
          %p157 = pneg %p55
        $region30: #{tpu_custom_call.1} parent=27 // pred_check_branch
          %159 = sbr.rel (%p157) target = $region32
        $region31: #{tpu_custom_call.1} parent=27 // pred_region
          %p160 = scmp.lt.s32.totalorder %s14, 1
          %s161 = scalar_select %p160, %s14, 1
          %s162 = smul.addr %s161, 8
          %s163 = smul.addr %s162, 8
          %s164 = scalar_lea.vmem %s1, %s163
        $region32: #{tpu_custom_call.1} parent=27 // pred_fallthru
          _
      $region28: #{tpu_custom_call.1} parent=5 // pred_fallthru
        _
      %p165 = scmp.le.s32.totalorder 1, %s14
      %p166 = scmp.lt.s32.totalorder %s14, 3
      %p167 = pnand %p165, %p166
      %p168 = pneg %p167
      // Predicated region
      $region33: #{tpu_custom_call.1} parent=5 // pred_check
        _
      $region34: #{tpu_custom_call.1} parent=5 // pred_check_branch
        %170 = sbr.rel (%p167) target = $region36
      $region35: #{tpu_custom_call.1} parent=5 // pred_region
        %s171 = ssub.s32 %s14, 1
        %p172 = pneg %p35
        %p173 = pneg %p32
        %p174 = scmp.lt.s32.totalorder %s19, 1
        %s175 = scalar_select %p174, %s19, 1
        %s176 = smul.addr %s175, 8
        %s177 = smul.addr %s176, 8
        %s178 = scalar_lea.vmem %s1, %s177
        %p179 = pneg %p61
        %p180 = pneg %p58
        %p181 = pneg %p82
        %p182 = pneg %p79
        %p183 = pneg %p103
        %p184 = pneg %p100
        %p185 = pneg %p129
        %p186 = pneg %p126
        %s187 = sand.u32 %s116, 1
        %s188 = scalar_lea.sflag [#allocation7], %s187
        %s189 = sand.u32 %s116, 1
        %s190 = smul.addr %s189, 64
        %s191 = scalar_lea.vmem [#allocation6], %s190
        %p192 = scmp.lt.s32.totalorder %s19, 1
        %s193 = scalar_select %p192, %s19, 1
        %s194 = smul.addr %s193, 8
        %s195 = smul.addr %s194, 8
        %s196 = scalar_lea.vmem %s1, %s195
        %v197 = vld [vmem:[%s2] sm:$0xff]
        %v198 = vld [vmem:[%s2 + $0x8] sm:$0xff]
        %v199 = vld [vmem:[%s2 + $0x10] sm:$0xff]
        %v200 = vld [vmem:[%s2 + $0x18] sm:$0xff]
        %v201 = vld [vmem:[%s2 + $0x20] sm:$0xff]
        %v202 = vld [vmem:[%s2 + $0x28] sm:$0xff]
        %v203 = vld [vmem:[%s196] sm:$0xff]
        %v204 = vld [vmem:[%s196 + $0x8] sm:$0xff]
        %v205 = vld [vmem:[%s196 + $0x10] sm:$0xff]
        %v206 = vld [vmem:[%s196 + $0x18] sm:$0xff]
        %v207 = vld [vmem:[%s196 + $0x20] sm:$0xff]
        %v208 = vld [vmem:[%s196 + $0x28] sm:$0xff]
        %v209 = vld [vmem:[%s196 + $0x30] sm:$0xff]
        %v210 = vld [vmem:[%s196 + $0x38] sm:$0xff]
        %v211 = vld [vmem:[%s3] sm:$0xff]
        %v212 = vld [vmem:[%s3 + $0x8] sm:$0xff]
        %v213 = vld [vmem:[%s3 + $0x10] sm:$0xff]
        %v214 = vld [vmem:[%s3 + $0x18] sm:$0xff]
        %v215 = vld [vmem:[%s3 + $0x20] sm:$0xff]
        %v216 = vld [vmem:[%s3 + $0x28] sm:$0xff]
        %218 = vset.pattern.permute.xlu0 0
        %219 = vperm.xlu0 %218, %v211
        %v220 = vpop.permute.xlu0 %219
        %223 = vset.pattern.permute.xlu0 0
        %224 = vperm.xlu0 %223, %v212
        %v225 = vpop.permute.xlu0 %224
        %228 = vset.pattern.permute.xlu0 0
        %229 = vperm.xlu0 %228, %v213
        %v230 = vpop.permute.xlu0 %229
        %233 = vset.pattern.permute.xlu0 0
        %234 = vperm.xlu0 %233, %v214
        %v235 = vpop.permute.xlu0 %234
        %238 = vset.pattern.permute.xlu0 0
        %239 = vperm.xlu0 %238, %v215
        %v240 = vpop.permute.xlu0 %239
        %243 = vset.pattern.permute.xlu0 0
        %244 = vperm.xlu0 %243, %v216
        %v245 = vpop.permute.xlu0 %244
        %vm247 = vcmask 261120
        %v249 = vsel %vm247, %v197, 0
        %v252 = vsel %vm247, %v198, 0
        %v255 = vsel %vm247, %v199, 0
        %v258 = vsel %vm247, %v200, 0
        %v261 = vsel %vm247, %v201, 0
        %v264 = vsel %vm247, %v202, 0
        %266 = vmatpush.msra.mxu0 0.0
        %267 = vmatpush.msra.mxu0 0.0
        %268 = vmatpush.msra.mxu0 0.0
        %269 = vmatpush.msra.mxu0 0.0
        %270 = vmatpush.msra.mxu0 0.0
        %271 = vmatpush.msra.mxu0 0.0
        %272 = vmatpush.msra.mxu0 0.0
        %273 = vmatpush.msra.mxu0 0.0
        %274 = vmatpush.msra.mxu0 0.0
        %275 = vmatpush.msra.mxu0 0.0
        %276 = vmatpush.msra.mxu0 0.0
        %277 = vmatpush.msra.mxu0 0.0
        %278 = vmatpush.msra.mxu0 %v209
        %279 = vmatpush.msra.mxu0 %v207
        %280 = vmatpush.msra.mxu0 %v205
        %281 = vmatpush.msra.mxu0 %v203
        %282 = vmatmul.f32.gmra.mxu0 %v249
        %v283 = vpop.f32.mrf.mxu0
        %v284 = vadd.f32 %v220, %v283
        %285 = vmatmul.f32.gmra.mxu0 %v252
        %v286 = vpop.f32.mrf.mxu0
        %v287 = vadd.f32 %v225, %v286
        %288 = vmatmul.f32.gmra.mxu0 %v255
        %v289 = vpop.f32.mrf.mxu0
        %v290 = vadd.f32 %v230, %v289
        %291 = vmatmul.f32.gmra.mxu0 %v258
        %v292 = vpop.f32.mrf.mxu0
        %v293 = vadd.f32 %v235, %v292
        %294 = vmatmul.f32.gmra.mxu0 %v261
        %v295 = vpop.f32.mrf.mxu0
        %v296 = vadd.f32 %v240, %v295
        %297 = vmatmul.f32.gmra.mxu0 %v264
        %v298 = vpop.f32.mrf.mxu0
        %v299 = vadd.f32 %v245, %v298
        %300 = vdwg.mxu0
        %301 = vmatpush.msra.mxu0 0.0
        %302 = vmatpush.msra.mxu0 0.0
        %303 = vmatpush.msra.mxu0 0.0
        %304 = vmatpush.msra.mxu0 0.0
        %305 = vmatpush.msra.mxu0 0.0
        %306 = vmatpush.msra.mxu0 0.0
        %307 = vmatpush.msra.mxu0 0.0
        %308 = vmatpush.msra.mxu0 0.0
        %309 = vmatpush.msra.mxu0 0.0
        %310 = vmatpush.msra.mxu0 0.0
        %311 = vmatpush.msra.mxu0 0.0
        %312 = vmatpush.msra.mxu0 0.0
        %313 = vmatpush.msra.mxu0 %v210
        %314 = vmatpush.msra.mxu0 %v208
        %315 = vmatpush.msra.mxu0 %v206
        %316 = vmatpush.msra.mxu0 %v204
        %317 = vmatmul.f32.gmra.mxu0 %v249
        %v318 = vpop.f32.mrf.mxu0
        %v319 = vadd.f32 %v220, %v318
        %320 = vmatmul.f32.gmra.mxu0 %v252
        %v321 = vpop.f32.mrf.mxu0
        %v322 = vadd.f32 %v225, %v321
        %323 = vmatmul.f32.gmra.mxu0 %v255
        %v324 = vpop.f32.mrf.mxu0
        %v325 = vadd.f32 %v230, %v324
        %326 = vmatmul.f32.gmra.mxu0 %v258
        %v327 = vpop.f32.mrf.mxu0
        %v328 = vadd.f32 %v235, %v327
        %329 = vmatmul.f32.gmra.mxu0 %v261
        %v330 = vpop.f32.mrf.mxu0
        %v331 = vadd.f32 %v240, %v330
        %332 = vmatmul.f32.gmra.mxu0 %v264
        %v333 = vpop.f32.mrf.mxu0
        %v334 = vadd.f32 %v245, %v333
        %335 = vdwg.mxu0
        %336 = vst [vmem:[#allocation2] sm:$0xff] %v284
        %337 = vst [vmem:[#allocation2 + $0x8] sm:$0xff] %v319
        %338 = vst [vmem:[#allocation3] sm:$0xff] %v290
        %339 = vst [vmem:[#allocation3 + $0x8] sm:$0xff] %v325
        %340 = vst [vmem:[#allocation3 + $0x10] sm:$0xff] %v293
        %341 = vst [vmem:[#allocation3 + $0x18] sm:$0xff] %v328
        %342 = vst [vmem:[#allocation3 + $0x20] sm:$0xff] %v296
        %343 = vst [vmem:[#allocation3 + $0x28] sm:$0xff] %v331
        %344 = vst [vmem:[#allocation3 + $0x30] sm:$0xff] %v299
        %345 = vst [vmem:[#allocation3 + $0x38] sm:$0xff] %v334
        %346 = vst [vmem:[#allocation4] sm:$0xff] 0.0
        %347 = vst [vmem:[#allocation4 + $0x8] sm:$0xff] 0.0
        %348 = vst [vmem:[#allocation4 + $0x10] sm:$0xff] 0.0
        %349 = vst [vmem:[#allocation4 + $0x18] sm:$0xff] 0.0
        %350 = vst [vmem:[#allocation4 + $0x20] sm:$0xff] 0.0
        %351 = vst [vmem:[#allocation4 + $0x28] sm:$0xff] 0.0
        %352 = vst [vmem:[#allocation4 + $0x30] sm:$0xff] 0.0
        %353 = vst [vmem:[#allocation4 + $0x38] sm:$0xff] 0.0
        %v354 = vld [vmem:[#allocation2] sm:$0xff]
        %v355 = vld [vmem:[#allocation2 + $0x8] sm:$0xff]
        %356 = vxpose.xlu0.b32.start [1/16] %v287, 128
        %357 = vxpose.xlu0.b32.cont [2/16] 0.0, 128
        %358 = vxpose.xlu0.b32.cont [3/16] 0.0, 128
        %359 = vxpose.xlu0.b32.cont [4/16] 0.0, 128
        %360 = vxpose.xlu0.b32.cont [5/16] 0.0, 128
        %361 = vxpose.xlu0.b32.cont [6/16] 0.0, 128
        %362 = vxpose.xlu0.b32.cont [7/16] 0.0, 128
        %363 = vxpose.xlu0.b32.cont [8/16] 0.0, 128
        %364 = vxpose.xlu0.b32.cont [9/16] 0.0, 128
        %365 = vxpose.xlu0.b32.cont [10/16] 0.0, 128
        %366 = vxpose.xlu0.b32.cont [11/16] 0.0, 128
        %367 = vxpose.xlu0.b32.cont [12/16] 0.0, 128
        %368 = vxpose.xlu0.b32.cont [13/16] 0.0, 128
        %369 = vxpose.xlu0.b32.cont [14/16] 0.0, 128
        %370 = vxpose.xlu0.b32.cont [15/16] 0.0, 128
        %371 = vxpose.xlu0.b32.end [16/16] 0.0, 128
        %v372 = vpop.trf.xlu0
        %v373 = vpop.trf.xlu0
        %v374 = vpop.trf.xlu0
        %v375 = vpop.trf.xlu0
        %v376 = vpop.trf.xlu0
        %v377 = vpop.trf.xlu0
        %v378 = vpop.trf.xlu0
        %v379 = vpop.trf.xlu0
        %v380 = vpop.trf.xlu0
        %v381 = vpop.trf.xlu0
        %v382 = vpop.trf.xlu0
        %v383 = vpop.trf.xlu0
        %v384 = vpop.trf.xlu0
        %v385 = vpop.trf.xlu0
        %v386 = vpop.trf.xlu0
        %v387 = vpop.trf.xlu0
        %388 = vxpose.xlu0.b32.start [1/16] %v322, 128
        %389 = vxpose.xlu0.b32.cont [2/16] 0.0, 128
        %390 = vxpose.xlu0.b32.cont [3/16] 0.0, 128
        %391 = vxpose.xlu0.b32.cont [4/16] 0.0, 128
        %392 = vxpose.xlu0.b32.cont [5/16] 0.0, 128
        %393 = vxpose.xlu0.b32.cont [6/16] 0.0, 128
        %394 = vxpose.xlu0.b32.cont [7/16] 0.0, 128
        %395 = vxpose.xlu0.b32.cont [8/16] 0.0, 128
        %396 = vxpose.xlu0.b32.cont [9/16] 0.0, 128
        %397 = vxpose.xlu0.b32.cont [10/16] 0.0, 128
        %398 = vxpose.xlu0.b32.cont [11/16] 0.0, 128
        %399 = vxpose.xlu0.b32.cont [12/16] 0.0, 128
        %400 = vxpose.xlu0.b32.cont [13/16] 0.0, 128
        %401 = vxpose.xlu0.b32.cont [14/16] 0.0, 128
        %402 = vxpose.xlu0.b32.cont [15/16] 0.0, 128
        %403 = vxpose.xlu0.b32.end [16/16] 0.0, 128
        %v404 = vpop.trf.xlu0
        %v405 = vpop.trf.xlu0
        %v406 = vpop.trf.xlu0
        %v407 = vpop.trf.xlu0
        %v408 = vpop.trf.xlu0
        %v409 = vpop.trf.xlu0
        %v410 = vpop.trf.xlu0
        %v411 = vpop.trf.xlu0
        %v412 = vpop.trf.xlu0
        %v413 = vpop.trf.xlu0
        %v414 = vpop.trf.xlu0
        %v415 = vpop.trf.xlu0
        %v416 = vpop.trf.xlu0
        %v417 = vpop.trf.xlu0
        %v418 = vpop.trf.xlu0
        %v419 = vpop.trf.xlu0
        %vm420 = vcmask 64512
        %v422 = vsel %vm420, %v372, 0
        %v425 = vsel %vm420, %v373, 0
        %v428 = vsel %vm420, %v374, 0
        %v431 = vsel %vm420, %v375, 0
        %v434 = vsel %vm420, %v376, 0
        %v437 = vsel %vm420, %v377, 0
        %v440 = vsel %vm420, %v378, 0
        %v443 = vsel %vm420, %v379, 0
        %v446 = vsel %vm420, %v380, 0
        %v449 = vsel %vm420, %v381, 0
        %v452 = vsel %vm420, %v382, 0
        %v455 = vsel %vm420, %v383, 0
        %v458 = vsel %vm420, %v384, 0
        %v461 = vsel %vm420, %v385, 0
        %v464 = vsel %vm420, %v386, 0
        %v467 = vsel %vm420, %v387, 0
        %v470 = vsel %vm420, %v404, 0
        %v473 = vsel %vm420, %v405, 0
        %v476 = vsel %vm420, %v406, 0
        %v479 = vsel %vm420, %v407, 0
        %v482 = vsel %vm420, %v408, 0
        %v485 = vsel %vm420, %v409, 0
        %v488 = vsel %vm420, %v410, 0
        %v491 = vsel %vm420, %v411, 0
        %v494 = vsel %vm420, %v412, 0
        %v497 = vsel %vm420, %v413, 0
        %v500 = vsel %vm420, %v414, 0
        %v503 = vsel %vm420, %v415, 0
        %v506 = vsel %vm420, %v416, 0
        %v509 = vsel %vm420, %v417, 0
        %v512 = vsel %vm420, %v418, 0
        %v515 = vsel %vm420, %v419, 0
        %517 = vmatpush.msra.mxu0 0.0
        %518 = vmatpush.msra.mxu0 0.0
        %519 = vmatpush.msra.mxu0 0.0
        %520 = vmatpush.msra.mxu0 0.0
        %521 = vmatpush.msra.mxu0 0.0
        %522 = vmatpush.msra.mxu0 0.0
        %523 = vmatpush.msra.mxu0 0.0
        %524 = vmatpush.msra.mxu0 0.0
        %525 = vmatpush.msra.mxu0 0.0
        %526 = vmatpush.msra.mxu0 0.0
        %527 = vmatpush.msra.mxu0 0.0
        %528 = vmatpush.msra.mxu0 0.0
        %529 = vmatpush.msra.mxu0 0.0
        %530 = vmatpush.msra.mxu0 0.0
        %531 = vmatpush.msra.mxu0 0.0
        %532 = vmatpush.msra.mxu0 %v354
        %533 = vmatmul.f32.gmra.mxu0 %v422
        %v534 = vpop.f32.mrf.mxu0
        %v535 = vadd.f32 0.0, %v534
        %536 = vmatmul.f32.gmra.mxu0 %v425
        %v537 = vpop.f32.mrf.mxu0
        %v538 = vadd.f32 0.0, %v537
        %539 = vmatmul.f32.gmra.mxu0 %v428
        %v540 = vpop.f32.mrf.mxu0
        %v541 = vadd.f32 0.0, %v540
        %542 = vmatmul.f32.gmra.mxu0 %v431
        %v543 = vpop.f32.mrf.mxu0
        %v544 = vadd.f32 0.0, %v543
        %545 = vmatmul.f32.gmra.mxu0 %v434
        %v546 = vpop.f32.mrf.mxu0
        %v547 = vadd.f32 0.0, %v546
        %548 = vmatmul.f32.gmra.mxu0 %v437
        %v549 = vpop.f32.mrf.mxu0
        %v550 = vadd.f32 0.0, %v549
        %551 = vmatmul.f32.gmra.mxu0 %v440
        %v552 = vpop.f32.mrf.mxu0
        %v553 = vadd.f32 0.0, %v552
        %554 = vmatmul.f32.gmra.mxu0 %v443
        %v555 = vpop.f32.mrf.mxu0
        %v556 = vadd.f32 0.0, %v555
        %557 = vmatmul.f32.gmra.mxu0 %v446
        %v558 = vpop.f32.mrf.mxu0
        %v559 = vadd.f32 0.0, %v558
        %560 = vmatmul.f32.gmra.mxu0 %v449
        %v561 = vpop.f32.mrf.mxu0
        %v562 = vadd.f32 0.0, %v561
        %563 = vmatmul.f32.gmra.mxu0 %v452
        %v564 = vpop.f32.mrf.mxu0
        %v565 = vadd.f32 0.0, %v564
        %566 = vmatmul.f32.gmra.mxu0 %v455
        %v567 = vpop.f32.mrf.mxu0
        %v568 = vadd.f32 0.0, %v567
        %569 = vmatmul.f32.gmra.mxu0 %v458
        %v570 = vpop.f32.mrf.mxu0
        %v571 = vadd.f32 0.0, %v570
        %572 = vmatmul.f32.gmra.mxu0 %v461
        %v573 = vpop.f32.mrf.mxu0
        %v574 = vadd.f32 0.0, %v573
        %575 = vmatmul.f32.gmra.mxu0 %v464
        %v576 = vpop.f32.mrf.mxu0
        %v577 = vadd.f32 0.0, %v576
        %578 = vmatmul.f32.gmra.mxu0 %v467
        %v579 = vpop.f32.mrf.mxu0
        %v580 = vadd.f32 0.0, %v579
        %581 = vmatmul.f32.gmra.mxu0 %v470
        %v582 = vpop.f32.mrf.mxu0
        %v583 = vadd.f32 0.0, %v582
        %584 = vmatmul.f32.gmra.mxu0 %v473
        %v585 = vpop.f32.mrf.mxu0
        %v586 = vadd.f32 0.0, %v585
        %587 = vmatmul.f32.gmra.mxu0 %v476
        %v588 = vpop.f32.mrf.mxu0
        %v589 = vadd.f32 0.0, %v588
        %590 = vmatmul.f32.gmra.mxu0 %v479
        %v591 = vpop.f32.mrf.mxu0
        %v592 = vadd.f32 0.0, %v591
        %593 = vmatmul.f32.gmra.mxu0 %v482
        %v594 = vpop.f32.mrf.mxu0
        %v595 = vadd.f32 0.0, %v594
        %596 = vmatmul.f32.gmra.mxu0 %v485
        %v597 = vpop.f32.mrf.mxu0
        %v598 = vadd.f32 0.0, %v597
        %599 = vmatmul.f32.gmra.mxu0 %v488
        %v600 = vpop.f32.mrf.mxu0
        %v601 = vadd.f32 0.0, %v600
        %602 = vmatmul.f32.gmra.mxu0 %v491
        %v603 = vpop.f32.mrf.mxu0
        %v604 = vadd.f32 0.0, %v603
        %605 = vmatmul.f32.gmra.mxu0 %v494
        %v606 = vpop.f32.mrf.mxu0
        %v607 = vadd.f32 0.0, %v606
        %608 = vmatmul.f32.gmra.mxu0 %v497
        %v609 = vpop.f32.mrf.mxu0
        %v610 = vadd.f32 0.0, %v609
        %611 = vmatmul.f32.gmra.mxu0 %v500
        %v612 = vpop.f32.mrf.mxu0
        %v613 = vadd.f32 0.0, %v612
        %614 = vmatmul.f32.gmra.mxu0 %v503
        %v615 = vpop.f32.mrf.mxu0
        %v616 = vadd.f32 0.0, %v615
        %617 = vmatmul.f32.gmra.mxu0 %v506
        %v618 = vpop.f32.mrf.mxu0
        %v619 = vadd.f32 0.0, %v618
        %620 = vmatmul.f32.gmra.mxu0 %v509
        %v621 = vpop.f32.mrf.mxu0
        %v622 = vadd.f32 0.0, %v621
        %623 = vmatmul.f32.gmra.mxu0 %v512
        %v624 = vpop.f32.mrf.mxu0
        %v625 = vadd.f32 0.0, %v624
        %626 = vmatmul.f32.gmra.mxu0 %v515
        %v627 = vpop.f32.mrf.mxu0
        %v628 = vadd.f32 0.0, %v627
        %629 = vdwg.mxu0
        %630 = vmatpush.msra.mxu0 0.0
        %631 = vmatpush.msra.mxu0 0.0
        %632 = vmatpush.msra.mxu0 0.0
        %633 = vmatpush.msra.mxu0 0.0
        %634 = vmatpush.msra.mxu0 0.0
        %635 = vmatpush.msra.mxu0 0.0
        %636 = vmatpush.msra.mxu0 0.0
        %637 = vmatpush.msra.mxu0 0.0
        %638 = vmatpush.msra.mxu0 0.0
        %639 = vmatpush.msra.mxu0 0.0
        %640 = vmatpush.msra.mxu0 0.0
        %641 = vmatpush.msra.mxu0 0.0
        %642 = vmatpush.msra.mxu0 0.0
        %643 = vmatpush.msra.mxu0 0.0
        %644 = vmatpush.msra.mxu0 0.0
        %645 = vmatpush.msra.mxu0 %v355
        %646 = vmatmul.f32.gmra.mxu0 %v422
        %v647 = vpop.f32.mrf.mxu0
        %v648 = vadd.f32 0.0, %v647
        %649 = vmatmul.f32.gmra.mxu0 %v425
        %v650 = vpop.f32.mrf.mxu0
        %v651 = vadd.f32 0.0, %v650
        %652 = vmatmul.f32.gmra.mxu0 %v428
        %v653 = vpop.f32.mrf.mxu0
        %v654 = vadd.f32 0.0, %v653
        %655 = vmatmul.f32.gmra.mxu0 %v431
        %v656 = vpop.f32.mrf.mxu0
        %v657 = vadd.f32 0.0, %v656
        %658 = vmatmul.f32.gmra.mxu0 %v434
        %v659 = vpop.f32.mrf.mxu0
        %v660 = vadd.f32 0.0, %v659
        %661 = vmatmul.f32.gmra.mxu0 %v437
        %v662 = vpop.f32.mrf.mxu0
        %v663 = vadd.f32 0.0, %v662
        %664 = vmatmul.f32.gmra.mxu0 %v440
        %v665 = vpop.f32.mrf.mxu0
        %v666 = vadd.f32 0.0, %v665
        %667 = vmatmul.f32.gmra.mxu0 %v443
        %v668 = vpop.f32.mrf.mxu0
        %v669 = vadd.f32 0.0, %v668
        %670 = vmatmul.f32.gmra.mxu0 %v446
        %v671 = vpop.f32.mrf.mxu0
        %v672 = vadd.f32 0.0, %v671
        %673 = vmatmul.f32.gmra.mxu0 %v449
        %v674 = vpop.f32.mrf.mxu0
        %v675 = vadd.f32 0.0, %v674
        %676 = vmatmul.f32.gmra.mxu0 %v452
        %v677 = vpop.f32.mrf.mxu0
        %v678 = vadd.f32 0.0, %v677
        %679 = vmatmul.f32.gmra.mxu0 %v455
        %v680 = vpop.f32.mrf.mxu0
        %v681 = vadd.f32 0.0, %v680
        %682 = vmatmul.f32.gmra.mxu0 %v458
        %v683 = vpop.f32.mrf.mxu0
        %v684 = vadd.f32 0.0, %v683
        %685 = vmatmul.f32.gmra.mxu0 %v461
        %v686 = vpop.f32.mrf.mxu0
        %v687 = vadd.f32 0.0, %v686
        %688 = vmatmul.f32.gmra.mxu0 %v464
        %v689 = vpop.f32.mrf.mxu0
        %v690 = vadd.f32 0.0, %v689
        %691 = vmatmul.f32.gmra.mxu0 %v467
        %v692 = vpop.f32.mrf.mxu0
        %v693 = vadd.f32 0.0, %v692
        %694 = vmatmul.f32.gmra.mxu0 %v470
        %v695 = vpop.f32.mrf.mxu0
        %v696 = vadd.f32 0.0, %v695
        %697 = vmatmul.f32.gmra.mxu0 %v473
        %v698 = vpop.f32.mrf.mxu0
        %v699 = vadd.f32 0.0, %v698
        %700 = vmatmul.f32.gmra.mxu0 %v476
        %v701 = vpop.f32.mrf.mxu0
        %v702 = vadd.f32 0.0, %v701
        %703 = vmatmul.f32.gmra.mxu0 %v479
        %v704 = vpop.f32.mrf.mxu0
        %v705 = vadd.f32 0.0, %v704
        %706 = vmatmul.f32.gmra.mxu0 %v482
        %v707 = vpop.f32.mrf.mxu0
        %v708 = vadd.f32 0.0, %v707
        %709 = vmatmul.f32.gmra.mxu0 %v485
        %v710 = vpop.f32.mrf.mxu0
        %v711 = vadd.f32 0.0, %v710
        %712 = vmatmul.f32.gmra.mxu0 %v488
        %v713 = vpop.f32.mrf.mxu0
        %v714 = vadd.f32 0.0, %v713
        %715 = vmatmul.f32.gmra.mxu0 %v491
        %v716 = vpop.f32.mrf.mxu0
        %v717 = vadd.f32 0.0, %v716
        %718 = vmatmul.f32.gmra.mxu0 %v494
        %v719 = vpop.f32.mrf.mxu0
        %v720 = vadd.f32 0.0, %v719
        %721 = vmatmul.f32.gmra.mxu0 %v497
        %v722 = vpop.f32.mrf.mxu0
        %v723 = vadd.f32 0.0, %v722
        %724 = vmatmul.f32.gmra.mxu0 %v500
        %v725 = vpop.f32.mrf.mxu0
        %v726 = vadd.f32 0.0, %v725
        %727 = vmatmul.f32.gmra.mxu0 %v503
        %v728 = vpop.f32.mrf.mxu0
        %v729 = vadd.f32 0.0, %v728
        %730 = vmatmul.f32.gmra.mxu0 %v506
        %v731 = vpop.f32.mrf.mxu0
        %v732 = vadd.f32 0.0, %v731
        %733 = vmatmul.f32.gmra.mxu0 %v509
        %v734 = vpop.f32.mrf.mxu0
        %v735 = vadd.f32 0.0, %v734
        %736 = vmatmul.f32.gmra.mxu0 %v512
        %v737 = vpop.f32.mrf.mxu0
        %v738 = vadd.f32 0.0, %v737
        %739 = vmatmul.f32.gmra.mxu0 %v515
        %v740 = vpop.f32.mrf.mxu0
        %v741 = vadd.f32 0.0, %v740
        %742 = vdwg.mxu0
        %v743 = vmax.f32 %v535, %v541
        %v744 = vmax.f32 %v538, %v544
        %v745 = vmax.f32 %v743, %v547
        %v746 = vmax.f32 %v744, %v550
        %v747 = vmax.f32 %v745, %v553
        %v748 = vmax.f32 %v746, %v556
        %v749 = vmax.f32 %v747, %v559
        %v750 = vmax.f32 %v748, %v562
        %v751 = vmax.f32 %v749, %v565
        %v752 = vmax.f32 %v750, %v568
        %v753 = vmax.f32 %v751, %v571
        %v754 = vmax.f32 %v752, %v574
        %v755 = vmax.f32 %v753, %v577
        %v756 = vmax.f32 %v754, %v580
        %v757 = vmax.f32 %v755, %v583
        %v758 = vmax.f32 %v756, %v586
        %v759 = vmax.f32 %v757, %v589
        %v760 = vmax.f32 %v758, %v592
        %v761 = vmax.f32 %v759, %v595
        %v762 = vmax.f32 %v760, %v598
        %v763 = vmax.f32 %v761, %v601
        %v764 = vmax.f32 %v762, %v604
        %v765 = vmax.f32 %v763, %v607
        %v766 = vmax.f32 %v764, %v610
        %v767 = vmax.f32 %v765, %v613
        %v768 = vmax.f32 %v766, %v616
        %v769 = vmax.f32 %v767, %v619
        %v770 = vmax.f32 %v768, %v622
        %v771 = vmax.f32 %v769, %v625
        %v772 = vmax.f32 %v770, %v628
        %v773 = vmax.f32 %v771, %v772
        %v774 = vrot.slane %v773, 4
        %v775 = vmax.f32 %v773, %v774
        %v776 = vrot.slane %v775, 2
        %v777 = vmax.f32 %v775, %v776
        %v778 = vrot.slane %v777, 1
        %v779 = vmax.f32 %v777, %v778
        %v780 = vmax.f32 %v648, %v654
        %v781 = vmax.f32 %v651, %v657
        %v782 = vmax.f32 %v780, %v660
        %v783 = vmax.f32 %v781, %v663
        %v784 = vmax.f32 %v782, %v666
        %v785 = vmax.f32 %v783, %v669
        %v786 = vmax.f32 %v784, %v672
        %v787 = vmax.f32 %v785, %v675
        %v788 = vmax.f32 %v786, %v678
        %v789 = vmax.f32 %v787, %v681
        %v790 = vmax.f32 %v788, %v684
        %v791 = vmax.f32 %v789, %v687
        %v792 = vmax.f32 %v790, %v690
        %v793 = vmax.f32 %v791, %v693
        %v794 = vmax.f32 %v792, %v696
        %v795 = vmax.f32 %v793, %v699
        %v796 = vmax.f32 %v794, %v702
        %v797 = vmax.f32 %v795, %v705
        %v798 = vmax.f32 %v796, %v708
        %v799 = vmax.f32 %v797, %v711
        %v800 = vmax.f32 %v798, %v714
        %v801 = vmax.f32 %v799, %v717
        %v802 = vmax.f32 %v800, %v720
        %v803 = vmax.f32 %v801, %v723
        %v804 = vmax.f32 %v802, %v726
        %v805 = vmax.f32 %v803, %v729
        %v806 = vmax.f32 %v804, %v732
        %v807 = vmax.f32 %v805, %v735
        %v808 = vmax.f32 %v806, %v738
        %v809 = vmax.f32 %v807, %v741
        %v810 = vmax.f32 %v808, %v809
        %v811 = vrot.slane %v810, 4
        %v812 = vmax.f32 %v810, %v811
        %v813 = vrot.slane %v812, 2
        %v814 = vmax.f32 %v812, %v813
        %v815 = vrot.slane %v814, 1
        %v816 = vmax.f32 %v814, %v815
        %v817 = vsub.f32 %v535, %v779
        %v818 = vsub.f32 %v648, %v816
        %v819 = vsub.f32 %v538, %v779
        %v820 = vsub.f32 %v651, %v816
        %v821 = vsub.f32 %v541, %v779
        %v822 = vsub.f32 %v654, %v816
        %v823 = vsub.f32 %v544, %v779
        %v824 = vsub.f32 %v657, %v816
        %v825 = vsub.f32 %v547, %v779
        %v826 = vsub.f32 %v660, %v816
        %v827 = vsub.f32 %v550, %v779
        %v828 = vsub.f32 %v663, %v816
        %v829 = vsub.f32 %v553, %v779
        %v830 = vsub.f32 %v666, %v816
        %v831 = vsub.f32 %v556, %v779
        %v832 = vsub.f32 %v669, %v816
        %v833 = vsub.f32 %v559, %v779
        %v834 = vsub.f32 %v672, %v816
        %v835 = vsub.f32 %v562, %v779
        %v836 = vsub.f32 %v675, %v816
        %v837 = vsub.f32 %v565, %v779
        %v838 = vsub.f32 %v678, %v816
        %v839 = vsub.f32 %v568, %v779
        %v840 = vsub.f32 %v681, %v816
        %v841 = vsub.f32 %v571, %v779
        %v842 = vsub.f32 %v684, %v816
        %v843 = vsub.f32 %v574, %v779
        %v844 = vsub.f32 %v687, %v816
        %v845 = vsub.f32 %v577, %v779
        %v846 = vsub.f32 %v690, %v816
        %v847 = vsub.f32 %v580, %v779
        %v848 = vsub.f32 %v693, %v816
        %v849 = vsub.f32 %v583, %v779
        %v850 = vsub.f32 %v696, %v816
        %v851 = vsub.f32 %v586, %v779
        %v852 = vsub.f32 %v699, %v816
        %v853 = vsub.f32 %v589, %v779
        %v854 = vsub.f32 %v702, %v816
        %v855 = vsub.f32 %v592, %v779
        %v856 = vsub.f32 %v705, %v816
        %v857 = vsub.f32 %v595, %v779
        %v858 = vsub.f32 %v708, %v816
        %v859 = vsub.f32 %v598, %v779
        %v860 = vsub.f32 %v711, %v816
        %v861 = vsub.f32 %v601, %v779
        %v862 = vsub.f32 %v714, %v816
        %v863 = vsub.f32 %v604, %v779
        %v864 = vsub.f32 %v717, %v816
        %v865 = vsub.f32 %v607, %v779
        %v866 = vsub.f32 %v720, %v816
        %v867 = vsub.f32 %v610, %v779
        %v868 = vsub.f32 %v723, %v816
        %v869 = vsub.f32 %v613, %v779
        %v870 = vsub.f32 %v726, %v816
        %v871 = vsub.f32 %v616, %v779
        %v872 = vsub.f32 %v729, %v816
        %v873 = vsub.f32 %v619, %v779
        %v874 = vsub.f32 %v732, %v816
        %v875 = vsub.f32 %v622, %v779
        %v876 = vsub.f32 %v735, %v816
        %v877 = vsub.f32 %v625, %v779
        %v878 = vsub.f32 %v738, %v816
        %v879 = vsub.f32 %v628, %v779
        %v880 = vsub.f32 %v741, %v816
        %v881 = vmul.f32 %v817, 1.442695
        %v882 = vpow.pop %v881
        %v883 = vmul.f32 %v818, 1.442695
        %v884 = vpow.pop %v883
        %v885 = vmul.f32 %v819, 1.442695
        %v886 = vpow.pop %v885
        %v887 = vmul.f32 %v820, 1.442695
        %v888 = vpow.pop %v887
        %v889 = vmul.f32 %v821, 1.442695
        %v890 = vpow.pop %v889
        %v891 = vmul.f32 %v822, 1.442695
        %v892 = vpow.pop %v891
        %v893 = vmul.f32 %v823, 1.442695
        %v894 = vpow.pop %v893
        %v895 = vmul.f32 %v824, 1.442695
        %v896 = vpow.pop %v895
        %v897 = vmul.f32 %v825, 1.442695
        %v898 = vpow.pop %v897
        %v899 = vmul.f32 %v826, 1.442695
        %v900 = vpow.pop %v899
        %v901 = vmul.f32 %v827, 1.442695
        %v902 = vpow.pop %v901
        %v903 = vmul.f32 %v828, 1.442695
        %v904 = vpow.pop %v903
        %v905 = vmul.f32 %v829, 1.442695
        %v906 = vpow.pop %v905
        %v907 = vmul.f32 %v830, 1.442695
        %v908 = vpow.pop %v907
        %v909 = vmul.f32 %v831, 1.442695
        %v910 = vpow.pop %v909
        %v911 = vmul.f32 %v832, 1.442695
        %v912 = vpow.pop %v911
        %v913 = vmul.f32 %v833, 1.442695
        %v914 = vpow.pop %v913
        %v915 = vmul.f32 %v834, 1.442695
        %v916 = vpow.pop %v915
        %v917 = vmul.f32 %v835, 1.442695
        %v918 = vpow.pop %v917
        %v919 = vmul.f32 %v836, 1.442695
        %v920 = vpow.pop %v919
        %v921 = vmul.f32 %v837, 1.442695
        %v922 = vpow.pop %v921
        %v923 = vmul.f32 %v838, 1.442695
        %v924 = vpow.pop %v923
        %v925 = vmul.f32 %v839, 1.442695
        %v926 = vpow.pop %v925
        %v927 = vmul.f32 %v840, 1.442695
        %v928 = vpow.pop %v927
        %v929 = vmul.f32 %v841, 1.442695
        %v930 = vpow.pop %v929
        %v931 = vmul.f32 %v842, 1.442695
        %v932 = vpow.pop %v931
        %v933 = vmul.f32 %v843, 1.442695
        %v934 = vpow.pop %v933
        %v935 = vmul.f32 %v844, 1.442695
        %v936 = vpow.pop %v935
        %v937 = vmul.f32 %v845, 1.442695
        %v938 = vpow.pop %v937
        %v939 = vmul.f32 %v846, 1.442695
        %v940 = vpow.pop %v939
        %v941 = vmul.f32 %v847, 1.442695
        %v942 = vpow.pop %v941
        %v943 = vmul.f32 %v848, 1.442695
        %v944 = vpow.pop %v943
        %v945 = vmul.f32 %v849, 1.442695
        %v946 = vpow.pop %v945
        %v947 = vmul.f32 %v850, 1.442695
        %v948 = vpow.pop %v947
        %v949 = vmul.f32 %v851, 1.442695
        %v950 = vpow.pop %v949
        %v951 = vmul.f32 %v852, 1.442695
        %v952 = vpow.pop %v951
        %v953 = vmul.f32 %v853, 1.442695
        %v954 = vpow.pop %v953
        %v955 = vmul.f32 %v854, 1.442695
        %v956 = vpow.pop %v955
        %v957 = vmul.f32 %v855, 1.442695
        %v958 = vpow.pop %v957
        %v959 = vmul.f32 %v856, 1.442695
        %v960 = vpow.pop %v959
        %v961 = vmul.f32 %v857, 1.442695
        %v962 = vpow.pop %v961
        %v963 = vmul.f32 %v858, 1.442695
        %v964 = vpow.pop %v963
        %v965 = vmul.f32 %v859, 1.442695
        %v966 = vpow.pop %v965
        %v967 = vmul.f32 %v860, 1.442695
        %v968 = vpow.pop %v967
        %v969 = vmul.f32 %v861, 1.442695
        %v970 = vpow.pop %v969
        %v971 = vmul.f32 %v862, 1.442695
        %v972 = vpow.pop %v971
        %v973 = vmul.f32 %v863, 1.442695
        %v974 = vpow.pop %v973
        %v975 = vmul.f32 %v864, 1.442695
        %v976 = vpow.pop %v975
        %v977 = vmul.f32 %v865, 1.442695
        %v978 = vpow.pop %v977
        %v979 = vmul.f32 %v866, 1.442695
        %v980 = vpow.pop %v979
        %v981 = vmul.f32 %v867, 1.442695
        %v982 = vpow.pop %v981
        %v983 = vmul.f32 %v868, 1.442695
        %v984 = vpow.pop %v983
        %v985 = vmul.f32 %v869, 1.442695
        %v986 = vpow.pop %v985
        %v987 = vmul.f32 %v870, 1.442695
        %v988 = vpow.pop %v987
        %v989 = vmul.f32 %v871, 1.442695
        %v990 = vpow.pop %v989
        %v991 = vmul.f32 %v872, 1.442695
        %v992 = vpow.pop %v991
        %v993 = vmul.f32 %v873, 1.442695
        %v994 = vpow.pop %v993
        %v995 = vmul.f32 %v874, 1.442695
        %v996 = vpow.pop %v995
        %v997 = vmul.f32 %v875, 1.442695
        %v998 = vpow.pop %v997
        %v999 = vmul.f32 %v876, 1.442695
        %v1000 = vpow.pop %v999
        %v1001 = vmul.f32 %v877, 1.442695
        %v1002 = vpow.pop %v1001
        %v1003 = vmul.f32 %v878, 1.442695
        %v1004 = vpow.pop %v1003
        %v1005 = vmul.f32 %v879, 1.442695
        %v1006 = vpow.pop %v1005
        %v1007 = vmul.f32 %v880, 1.442695
        %v1008 = vpow.pop %v1007
        %v1009 = vadd.f32 %v882, %v886
        %v1010 = vadd.f32 %v1009, %v890
        %v1011 = vadd.f32 %v1010, %v894
        %v1012 = vadd.f32 %v1011, %v898
        %v1013 = vadd.f32 %v1012, %v902
        %v1014 = vadd.f32 %v1013, %v906
        %v1015 = vadd.f32 %v1014, %v910
        %v1016 = vadd.f32 %v1015, %v914
        %v1017 = vadd.f32 %v1016, %v918
        %v1018 = vadd.f32 %v1017, %v922
        %v1019 = vadd.f32 %v1018, %v926
        %v1020 = vadd.f32 %v1019, %v930
        %v1021 = vadd.f32 %v1020, %v934
        %v1022 = vadd.f32 %v1021, %v938
        %v1023 = vadd.f32 %v1022, %v942
        %v1024 = vadd.f32 %v1023, %v946
        %v1025 = vadd.f32 %v1024, %v950
        %v1026 = vadd.f32 %v1025, %v954
        %v1027 = vadd.f32 %v1026, %v958
        %v1028 = vadd.f32 %v1027, %v962
        %v1029 = vadd.f32 %v1028, %v966
        %v1030 = vadd.f32 %v1029, %v970
        %v1031 = vadd.f32 %v1030, %v974
        %v1032 = vadd.f32 %v1031, %v978
        %v1033 = vadd.f32 %v1032, %v982
        %v1034 = vadd.f32 %v1033, %v986
        %v1035 = vadd.f32 %v1034, %v990
        %v1036 = vadd.f32 %v1035, %v994
        %v1037 = vadd.f32 %v1036, %v998
        %v1038 = vadd.f32 %v1037, %v1002
        %v1039 = vadd.f32 %v1038, %v1006
        %v1040 = vrot.slane %v1039, 4
        %v1041 = vadd.f32 %v1039, %v1040
        %v1042 = vrot.slane %v1041, 2
        %v1043 = vadd.f32 %v1041, %v1042
        %v1044 = vrot.slane %v1043, 1
        %v1045 = vadd.f32 %v1043, %v1044
        %v1046 = vadd.f32 %v884, %v888
        %v1047 = vadd.f32 %v1046, %v892
        %v1048 = vadd.f32 %v1047, %v896
        %v1049 = vadd.f32 %v1048, %v900
        %v1050 = vadd.f32 %v1049, %v904
        %v1051 = vadd.f32 %v1050, %v908
        %v1052 = vadd.f32 %v1051, %v912
        %v1053 = vadd.f32 %v1052, %v916
        %v1054 = vadd.f32 %v1053, %v920
        %v1055 = vadd.f32 %v1054, %v924
        %v1056 = vadd.f32 %v1055, %v928
        %v1057 = vadd.f32 %v1056, %v932
        %v1058 = vadd.f32 %v1057, %v936
        %v1059 = vadd.f32 %v1058, %v940
        %v1060 = vadd.f32 %v1059, %v944
        %v1061 = vadd.f32 %v1060, %v948
        %v1062 = vadd.f32 %v1061, %v952
        %v1063 = vadd.f32 %v1062, %v956
        %v1064 = vadd.f32 %v1063, %v960
        %v1065 = vadd.f32 %v1064, %v964
        %v1066 = vadd.f32 %v1065, %v968
        %v1067 = vadd.f32 %v1066, %v972
        %v1068 = vadd.f32 %v1067, %v976
        %v1069 = vadd.f32 %v1068, %v980
        %v1070 = vadd.f32 %v1069, %v984
        %v1071 = vadd.f32 %v1070, %v988
        %v1072 = vadd.f32 %v1071, %v992
        %v1073 = vadd.f32 %v1072, %v996
        %v1074 = vadd.f32 %v1073, %v1000
        %v1075 = vadd.f32 %v1074, %v1004
        %v1076 = vadd.f32 %v1075, %v1008
        %v1077 = vrot.slane %v1076, 4
        %v1078 = vadd.f32 %v1076, %v1077
        %v1079 = vrot.slane %v1078, 2
        %v1080 = vadd.f32 %v1078, %v1079
        %v1081 = vrot.slane %v1080, 1
        %v1082 = vadd.f32 %v1080, %v1081
        %v1083 = vrcp.pop %v1045
        %v1084 = vmul.f32 %v1045, %v1083
        %v1085 = vsub.f32 1.0, %v1084
        %v1086 = vmul.f32 %v1083, %v1085
        %v1087 = vadd.f32 %v1083, %v1086
        %vm1088 = vweird.f32 %v1045
        %vm1089 = vweird.f32 %v1083
        %vm1090 = vmor %vm1088, %vm1089
        %v1091 = vsel %vm1090, %v1083, %v1087
        %v1092 = vand.u32 2147483647, %v1045
        %vm1093 = vcmp.eq.f32.partialorder %v1092, 8.507059e+37
        %v1094 = vand.u32 %v1045, 2147483648
        %v1095 = vor.u32 1.1754944e-38, %v1094
        %v1096 = vsel %vm1093, %v1095, %v1091
        %v1097 = vrcp.pop %v1082
        %v1098 = vmul.f32 %v1082, %v1097
        %v1099 = vsub.f32 1.0, %v1098
        %v1100 = vmul.f32 %v1097, %v1099
        %v1101 = vadd.f32 %v1097, %v1100
        %vm1102 = vweird.f32 %v1082
        %vm1103 = vweird.f32 %v1097
        %vm1104 = vmor %vm1102, %vm1103
        %v1105 = vsel %vm1104, %v1097, %v1101
        %v1106 = vand.u32 2147483647, %v1082
        %vm1107 = vcmp.eq.f32.partialorder %v1106, 8.507059e+37
        %v1108 = vand.u32 %v1082, 2147483648
        %v1109 = vor.u32 1.1754944e-38, %v1108
        %v1110 = vsel %vm1107, %v1109, %v1105
        %v1111 = vld [vmem:[#allocation3] sm:$0xff]
        %v1112 = vld [vmem:[#allocation3 + $0x8] sm:$0xff]
        %v1113 = vld [vmem:[#allocation3 + $0x10] sm:$0xff]
        %v1114 = vld [vmem:[#allocation3 + $0x18] sm:$0xff]
        %v1115 = vld [vmem:[#allocation3 + $0x20] sm:$0xff]
        %v1116 = vld [vmem:[#allocation3 + $0x28] sm:$0xff]
        %v1117 = vld [vmem:[#allocation3 + $0x30] sm:$0xff]
        %v1118 = vld [vmem:[#allocation3 + $0x38] sm:$0xff]
        %v1119 = vmul.f32 %v1111, %v1096
        %v1120 = vmul.f32 %v1112, %v1110
        %v1121 = vmul.f32 %v1113, %v1096
        %v1122 = vmul.f32 %v1114, %v1110
        %v1123 = vmul.f32 %v1115, %v1096
        %v1124 = vmul.f32 %v1116, %v1110
        %v1125 = vmul.f32 %v1117, %v1096
        %v1126 = vmul.f32 %v1118, %v1110
        %v1127 = vld [vmem:[#allocation4] sm:$0xff]
        %v1128 = vld [vmem:[#allocation4 + $0x8] sm:$0xff]
        %v1129 = vld [vmem:[#allocation4 + $0x10] sm:$0xff]
        %v1130 = vld [vmem:[#allocation4 + $0x18] sm:$0xff]
        %v1131 = vld [vmem:[#allocation4 + $0x20] sm:$0xff]
        %v1132 = vld [vmem:[#allocation4 + $0x28] sm:$0xff]
        %v1133 = vld [vmem:[#allocation4 + $0x30] sm:$0xff]
        %v1134 = vld [vmem:[#allocation4 + $0x38] sm:$0xff]
        %1135 = vmatpush.xpose.msra.mxu0 %v942
        %1136 = vmatpush.xpose.msra.mxu0 %v938
        %1137 = vmatpush.xpose.msra.mxu0 %v934
        %1138 = vmatpush.xpose.msra.mxu0 %v930
        %1139 = vmatpush.xpose.msra.mxu0 %v926
        %1140 = vmatpush.xpose.msra.mxu0 %v922
        %1141 = vmatpush.xpose.msra.mxu0 %v918
        %1142 = vmatpush.xpose.msra.mxu0 %v914
        %1143 = vmatpush.xpose.msra.mxu0 %v910
        %1144 = vmatpush.xpose.msra.mxu0 %v906
        %1145 = vmatpush.xpose.msra.mxu0 %v902
        %1146 = vmatpush.xpose.msra.mxu0 %v898
        %1147 = vmatpush.xpose.msra.mxu0 %v894
        %1148 = vmatpush.xpose.msra.mxu0 %v890
        %1149 = vmatpush.xpose.msra.mxu0 %v886
        %1150 = vmatpush.xpose.msra.mxu0 %v882
        %1151 = vmatmul.f32.gmra.mxu0 %v1119
        %v1152 = vpop.f32.mrf.mxu0
        %v1153 = vadd.f32 0.0, %v1152
        %1154 = vmatmul.f32.gmra.mxu0 %v1121
        %v1155 = vpop.f32.mrf.mxu0
        %v1156 = vadd.f32 0.0, %v1155
        %1157 = vmatmul.f32.gmra.mxu0 %v1123
        %v1158 = vpop.f32.mrf.mxu0
        %v1159 = vadd.f32 0.0, %v1158
        %1160 = vmatmul.f32.gmra.mxu0 %v1125
        %v1161 = vpop.f32.mrf.mxu0
        %v1162 = vadd.f32 0.0, %v1161
        %1163 = vdwg.mxu0
        %1164 = vmatpush.xpose.msra.mxu0 %v944
        %1165 = vmatpush.xpose.msra.mxu0 %v940
        %1166 = vmatpush.xpose.msra.mxu0 %v936
        %1167 = vmatpush.xpose.msra.mxu0 %v932
        %1168 = vmatpush.xpose.msra.mxu0 %v928
        %1169 = vmatpush.xpose.msra.mxu0 %v924
        %1170 = vmatpush.xpose.msra.mxu0 %v920
        %1171 = vmatpush.xpose.msra.mxu0 %v916
        %1172 = vmatpush.xpose.msra.mxu0 %v912
        %1173 = vmatpush.xpose.msra.mxu0 %v908
        %1174 = vmatpush.xpose.msra.mxu0 %v904
        %1175 = vmatpush.xpose.msra.mxu0 %v900
        %1176 = vmatpush.xpose.msra.mxu0 %v896
        %1177 = vmatpush.xpose.msra.mxu0 %v892
        %1178 = vmatpush.xpose.msra.mxu0 %v888
        %1179 = vmatpush.xpose.msra.mxu0 %v884
        %1180 = vmatmul.f32.gmra.mxu0 %v1120
        %v1181 = vpop.f32.mrf.mxu0
        %v1182 = vadd.f32 %v1153, %v1181
        %1183 = vmatmul.f32.gmra.mxu0 %v1122
        %v1184 = vpop.f32.mrf.mxu0
        %v1185 = vadd.f32 %v1156, %v1184
        %1186 = vmatmul.f32.gmra.mxu0 %v1124
        %v1187 = vpop.f32.mrf.mxu0
        %v1188 = vadd.f32 %v1159, %v1187
        %1189 = vmatmul.f32.gmra.mxu0 %v1126
        %v1190 = vpop.f32.mrf.mxu0
        %v1191 = vadd.f32 %v1162, %v1190
        %1192 = vdwg.mxu0
        %1193 = vmatpush.xpose.msra.mxu0 %v1006
        %1194 = vmatpush.xpose.msra.mxu0 %v1002
        %1195 = vmatpush.xpose.msra.mxu0 %v998
        %1196 = vmatpush.xpose.msra.mxu0 %v994
        %1197 = vmatpush.xpose.msra.mxu0 %v990
        %1198 = vmatpush.xpose.msra.mxu0 %v986
        %1199 = vmatpush.xpose.msra.mxu0 %v982
        %1200 = vmatpush.xpose.msra.mxu0 %v978
        %1201 = vmatpush.xpose.msra.mxu0 %v974
        %1202 = vmatpush.xpose.msra.mxu0 %v970
        %1203 = vmatpush.xpose.msra.mxu0 %v966
        %1204 = vmatpush.xpose.msra.mxu0 %v962
        %1205 = vmatpush.xpose.msra.mxu0 %v958
        %1206 = vmatpush.xpose.msra.mxu0 %v954
        %1207 = vmatpush.xpose.msra.mxu0 %v950
        %1208 = vmatpush.xpose.msra.mxu0 %v946
        %1209 = vmatmul.f32.gmra.mxu0 %v1119
        %v1210 = vpop.f32.mrf.mxu0
        %v1211 = vadd.f32 0.0, %v1210
        %1212 = vmatmul.f32.gmra.mxu0 %v1121
        %v1213 = vpop.f32.mrf.mxu0
        %v1214 = vadd.f32 0.0, %v1213
        %1215 = vmatmul.f32.gmra.mxu0 %v1123
        %v1216 = vpop.f32.mrf.mxu0
        %v1217 = vadd.f32 0.0, %v1216
        %1218 = vmatmul.f32.gmra.mxu0 %v1125
        %v1219 = vpop.f32.mrf.mxu0
        %v1220 = vadd.f32 0.0, %v1219
        %1221 = vdwg.mxu0
        %1222 = vmatpush.xpose.msra.mxu0 %v1008
        %1223 = vmatpush.xpose.msra.mxu0 %v1004
        %1224 = vmatpush.xpose.msra.mxu0 %v1000
        %1225 = vmatpush.xpose.msra.mxu0 %v996
        %1226 = vmatpush.xpose.msra.mxu0 %v992
        %1227 = vmatpush.xpose.msra.mxu0 %v988
        %1228 = vmatpush.xpose.msra.mxu0 %v984
        %1229 = vmatpush.xpose.msra.mxu0 %v980
        %1230 = vmatpush.xpose.msra.mxu0 %v976
        %1231 = vmatpush.xpose.msra.mxu0 %v972
        %1232 = vmatpush.xpose.msra.mxu0 %v968
        %1233 = vmatpush.xpose.msra.mxu0 %v964
        %1234 = vmatpush.xpose.msra.mxu0 %v960
        %1235 = vmatpush.xpose.msra.mxu0 %v956
        %1236 = vmatpush.xpose.msra.mxu0 %v952
        %1237 = vmatpush.xpose.msra.mxu0 %v948
        %1238 = vmatmul.f32.gmra.mxu0 %v1120
        %v1239 = vpop.f32.mrf.mxu0
        %v1240 = vadd.f32 %v1211, %v1239
        %1241 = vmatmul.f32.gmra.mxu0 %v1122
        %v1242 = vpop.f32.mrf.mxu0
        %v1243 = vadd.f32 %v1214, %v1242
        %1244 = vmatmul.f32.gmra.mxu0 %v1124
        %v1245 = vpop.f32.mrf.mxu0
        %v1246 = vadd.f32 %v1217, %v1245
        %1247 = vmatmul.f32.gmra.mxu0 %v1126
        %v1248 = vpop.f32.mrf.mxu0
        %v1249 = vadd.f32 %v1220, %v1248
        %1250 = vdwg.mxu0
        %v1251 = vadd.f32 %v1127, %v1182
        %v1252 = vadd.f32 %v1128, %v1240
        %v1253 = vadd.f32 %v1129, %v1185
        %v1254 = vadd.f32 %v1130, %v1243
        %v1255 = vadd.f32 %v1131, %v1188
        %v1256 = vadd.f32 %v1132, %v1246
        %v1257 = vadd.f32 %v1133, %v1191
        %v1258 = vadd.f32 %v1134, %v1249
        %1259 = vst [vmem:[#allocation4] sm:$0xff] %v1251
        %1260 = vst [vmem:[#allocation4 + $0x8] sm:$0xff] %v1252
        %1261 = vst [vmem:[#allocation4 + $0x10] sm:$0xff] %v1253
        %1262 = vst [vmem:[#allocation4 + $0x18] sm:$0xff] %v1254
        %1263 = vst [vmem:[#allocation4 + $0x20] sm:$0xff] %v1255
        %1264 = vst [vmem:[#allocation4 + $0x28] sm:$0xff] %v1256
        %1265 = vst [vmem:[#allocation4 + $0x30] sm:$0xff] %v1257
        %1266 = vst [vmem:[#allocation4 + $0x38] sm:$0xff] %v1258
        %s1267 = sld [smem:[#allocation5]]
        %v1268 = vld [vmem:[#allocation4] sm:$0xff]
        %v1269 = vld [vmem:[#allocation4 + $0x8] sm:$0xff]
        %v1270 = vld [vmem:[#allocation4 + $0x10] sm:$0xff]
        %v1271 = vld [vmem:[#allocation4 + $0x18] sm:$0xff]
        %v1272 = vld [vmem:[#allocation4 + $0x20] sm:$0xff]
        %v1273 = vld [vmem:[#allocation4 + $0x28] sm:$0xff]
        %v1274 = vld [vmem:[#allocation4 + $0x30] sm:$0xff]
        %v1275 = vld [vmem:[#allocation4 + $0x38] sm:$0xff]
        %v1276 = vstv %s1267
        %v1277 = vmul.f32 %v1276, %v1268
        %v1278 = vmul.f32 %v1276, %v1269
        %v1279 = vmul.f32 %v1276, %v1270
        %v1280 = vmul.f32 %v1276, %v1271
        %v1281 = vmul.f32 %v1276, %v1272
        %v1282 = vmul.f32 %v1276, %v1273
        %v1283 = vmul.f32 %v1276, %v1274
        %v1284 = vmul.f32 %v1276, %v1275
        %v1285 = vld [vmem:[%s196] sm:$0xff]
        %v1286 = vld [vmem:[%s196 + $0x8] sm:$0xff]
        %v1287 = vld [vmem:[%s196 + $0x10] sm:$0xff]
        %v1288 = vld [vmem:[%s196 + $0x18] sm:$0xff]
        %v1289 = vld [vmem:[%s196 + $0x20] sm:$0xff]
        %v1290 = vld [vmem:[%s196 + $0x28] sm:$0xff]
        %v1291 = vld [vmem:[%s196 + $0x30] sm:$0xff]
        %v1292 = vld [vmem:[%s196 + $0x38] sm:$0xff]
        %v1293 = vadd.f32 %v1277, %v1285
        %v1294 = vadd.f32 %v1278, %v1286
        %v1295 = vadd.f32 %v1279, %v1287
        %v1296 = vadd.f32 %v1280, %v1288
        %v1297 = vadd.f32 %v1281, %v1289
        %v1298 = vadd.f32 %v1282, %v1290
        %v1299 = vadd.f32 %v1283, %v1291
        %v1300 = vadd.f32 %v1284, %v1292
        %1301 = vst [vmem:[%s191] sm:$0xff] %v1293
        %1302 = vst [vmem:[%s191 + $0x8] sm:$0xff] %v1294
        %1303 = vst [vmem:[%s191 + $0x10] sm:$0xff] %v1295
        %1304 = vst [vmem:[%s191 + $0x18] sm:$0xff] %v1296
        %1305 = vst [vmem:[%s191 + $0x20] sm:$0xff] %v1297
        %1306 = vst [vmem:[%s191 + $0x28] sm:$0xff] %v1298
        %1307 = vst [vmem:[%s191 + $0x30] sm:$0xff] %v1299
        %1308 = vst [vmem:[%s191 + $0x38] sm:$0xff] %v1300
        %s1309 = sand.u32 %s116, 1
        %s1310 = scalar_lea.sflag [#allocation7], %s1309
        %s1311 = sand.u32 %s116, 1
        %s1312 = smul.addr %s1311, 64
        %s1313 = scalar_lea.vmem [#allocation6], %s1312
        // Predicated region
        $region37: #{tpu_custom_call.1} parent=35 // pred_check
          %p1314 = pneg %p126
        $region38: #{tpu_custom_call.1} parent=35 // pred_check_branch
          %1316 = sbr.rel (%p1314) target = $region40
        $region39: #{tpu_custom_call.1} parent=35 // pred_region
          %1318 = vsyncadd %s1310, 0
          %s1319 = smul.addr %s19, 8
          %s1320 = smul.addr %s1319, 8
          %s1321 = scalar_lea.hbm %s4, %s1320
          %s1322 = sshll.u32 %s1313, 4
          %s1323 = int_to_ptr.vmem [resolvable:$true] %s1322
          %s1324 = sshll.u32 %s1321, 4
          %s1325 = int_to_ptr.hbm [resolvable:$true] %s1324
          %1330 = dma.vmem_to_hbm [thread:$0]  %s1323, 1024, %s1325, %s1310, 256, 256, 16
        $region40: #{tpu_custom_call.1} parent=35 // pred_fallthru
          _
      $region36: #{tpu_custom_call.1} parent=5 // pred_fallthru
        _
      %p1331 = scmp.le.s32.totalorder 2, %s14
      // Predicated region
      $region41: #{tpu_custom_call.1} parent=5 // pred_check
        %p1332 = pneg %p1331
      $region42: #{tpu_custom_call.1} parent=5 // pred_check_branch
        %1334 = sbr.rel (%p1332) target = $region44
      $region43: #{tpu_custom_call.1} parent=5 // pred_region
        %s1335 = ssub.s32 %s14, 2
        // Predicated region
        $region45: #{tpu_custom_call.1} parent=43 // pred_check
          %p1336 = pneg %p132
        $region46: #{tpu_custom_call.1} parent=43 // pred_check_branch
          %1338 = sbr.rel (%p1336) target = $region48
        $region47: #{tpu_custom_call.1} parent=43 // pred_region
          %s1339 = sand.u32 %s117, 1
          %s1340 = scalar_lea.sflag [#allocation7], %s1339
          %s1341 = sand.u32 %s117, 1
          %s1342 = smul.addr %s1341, 64
          %s1343 = scalar_lea.vmem [#allocation6], %s1342
          %1345 = dma.done %s1340, 1024
        $region48: #{tpu_custom_call.1} parent=43 // pred_fallthru
          _
      $region44: #{tpu_custom_call.1} parent=5 // pred_fallthru
        _
    $region6: #{tpu_custom_call.1} parent=1 // loop_footer
      %s18 = sadd.s32 1, %s14
    $region7: #{tpu_custom_call.1} parent=1 // loop_footer_branch
      %13 = sbr.rel target = $region3
    $region8: #{tpu_custom_call.1} parent=1 // loop_exit
      _
    %1346 = vsyncpa [#allocation7], 1
    %s1347 = scalar_lea.sflag [#allocation7], 1
    %1348 = vsyncpa %s1347, 1

</llo_original>
